<compile_context>
chip_gen: v6e
topology: v6e:2x2x1
jax: 0.10.0
libtpu: 0.0.40
codegen_flags: <defaults>
</compile_context>

<pallas_src>
import functools

import jax
import jax.numpy as jnp
from jax.experimental import pallas as pl
from jax.experimental.pallas import tpu as pltpu


def _sublane(dtype):
    # sublane packing: 8 rows for 32-bit, 16 for bf16, 32 for 8-bit dtypes
    return max(8, 32 // jnp.dtype(dtype).itemsize)


def _choose_tile_n(n, c, dtype, max_tile_bytes=2 * 1024 * 1024):
    sub = _sublane(dtype)
    itemsize = jnp.dtype(dtype).itemsize
    rows_by_vmem = max(sub, max_tile_bytes // max(1, c * itemsize))
    n_round = ((n + sub - 1) // sub) * sub
    tile = min(512, rows_by_vmem, n_round)
    tile = max(sub, (tile // sub) * sub)
    return int(tile)


def _label_smoothing_kernel(pred_ref, tgt_ref, out_ref, *, confidence, smoothing):
    tile_n, c = pred_ref.shape
    pred = pred_ref[...].astype(jnp.float32)          # native-dtype tile -> f32 in VMEM
    tgt = tgt_ref[...]                                 # (tile_n, 1) int32

    # numerically stable log-sum-exp along the class (lane) axis
    m = jnp.max(pred, axis=-1, keepdims=True)
    shifted = pred - m
    lse = jnp.log(jnp.sum(jnp.exp(shifted), axis=-1, keepdims=True))

    # folded loss: no logp / true_dist temporaries
    col = jax.lax.broadcasted_iota(jnp.int32, (tile_n, c), 1)
    shifted_tgt = jnp.sum(jnp.where(col == tgt, shifted, 0.0), axis=-1, keepdims=True)
    sum_shifted = jnp.sum(shifted, axis=-1, keepdims=True)

    out_ref[...] = (confidence * (lse - shifted_tgt)
                    + (smoothing / c) * (c * lse - sum_shifted))


def label_smoothing_loss(pred, target, smoothing=0.1, tile_n=None):
    """pred: (N, C) float logits (any float dtype); target: (N,) int. Returns scalar f32 loss."""
    confidence = 1.0 - smoothing
    n, c = pred.shape
    sub = _sublane(pred.dtype)
    if tile_n is None:
        tile_n = _choose_tile_n(n, c, pred.dtype)
    else:
        tile_n = max(sub, (int(tile_n) // sub) * sub)

    num_tiles = pl.cdiv(n, tile_n)
    n_pad = num_tiles * tile_n

    tgt2d = target.astype(jnp.int32).reshape(n, 1)
    if n_pad != n:  # pad ragged batch; padded rows are sliced off before the mean
        pred = jnp.pad(pred, ((0, n_pad - n), (0, 0)))
        tgt2d = jnp.pad(tgt2d, ((0, n_pad - n), (0, 0)))

    kernel = functools.partial(
        _label_smoothing_kernel,
        confidence=float(confidence), smoothing=float(smoothing),
    )

    per_row = pl.pallas_call(
        kernel,
        out_shape=jax.ShapeDtypeStruct((n_pad, 1), jnp.float32),
        grid=(num_tiles,),
        in_specs=[
            pl.BlockSpec((tile_n, c), lambda i: (i, 0)),
            pl.BlockSpec((tile_n, 1), lambda i: (i, 0)),
        ],
        out_specs=pl.BlockSpec((tile_n, 1), lambda i: (i, 0)),
        compiler_params=pltpu.CompilerParams(
            dimension_semantics=("parallel",),
            vmem_limit_bytes=32 * 1024 * 1024,
        ),
    )(pred, tgt2d)

    return jnp.sum(per_row[:n, 0]) / n


def _reference(pred, target, smoothing):
    p = pred.astype(jnp.float32)
    c = p.shape[-1]
    logp = jax.nn.log_softmax(p, axis=-1)
    td = jax.nn.one_hot(target, c, dtype=jnp.float32) * (1.0 - smoothing) + smoothing / c
    return jnp.mean(jnp.sum(-td * logp, axis=-1))


if __name__ == "__main__":
    key = jax.random.PRNGKey(0)
    k1, k2, k3, k4 = jax.random.split(key, 4)
    smoothing = 0.1

    # Case 1: bf16 logits fed in their native dtype (cast to f32 inside the kernel).
    n1, c1 = 64, 128
    pred1 = jax.random.normal(k1, (n1, c1), dtype=jnp.float32).astype(jnp.bfloat16)
    tgt1 = jax.random.randint(k2, (n1,), 0, c1, dtype=jnp.int32)
    loss1 = label_smoothing_loss(pred1, tgt1, smoothing=smoothing)
    jax.block_until_ready(loss1)
    ref1 = _reference(pred1, tgt1, smoothing)
    assert jnp.allclose(loss1, ref1, atol=1e-4, rtol=1e-4), (loss1, ref1)

    # Case 2: f32 logits, ragged batch (N=50) tiled over 4 grid steps of 16 rows each.
    n2, c2 = 50, 32
    pred2 = jax.random.normal(k3, (n2, c2), dtype=jnp.float32)
    tgt2 = jax.random.randint(k4, (n2,), 0, c2, dtype=jnp.int32)
    loss2 = label_smoothing_loss(pred2, tgt2, smoothing=smoothing, tile_n=16)
    jax.block_until_ready(loss2)
    ref2 = _reference(pred2, tgt2, smoothing)
    assert jnp.allclose(loss2, ref2, atol=1e-5, rtol=1e-5), (loss2, ref2)

    print("KERNEL_OK")
</pallas_src>

<mosaic_0001>
module attributes {stable_mosaic.version = 11 : i64} {
  func.func @_label_smoothing_kernel(%arg0: i32, %arg1: memref<64x128xbf16, #tpu.memory_space<vmem>>, %arg2: memref<64x1xi32, #tpu.memory_space<vmem>>, %arg3: memref<64x1xf32, #tpu.memory_space<vmem>>) attributes {dimension_semantics = [#tpu.dimension_semantics<parallel>], iteration_bounds = array<i64: 1>, scalar_prefetch = 0 : i64, scratch_operands = 0 : i64, tpu.core_type = #tpu.core_type<tc>, window_params = [{transform_indices = @transform_0, window_bounds = array<i64: 64, 128>}, {transform_indices = @transform_1, window_bounds = array<i64: 64, 1>}, {transform_indices = @transform_2, window_bounds = array<i64: 64, 1>}]} {
    %c0 = arith.constant 0 : index
    %c0_0 = arith.constant 0 : index
    %0 = vector.load %arg1[%c0, %c0_0] : memref<64x128xbf16, #tpu.memory_space<vmem>>, vector<64x128xbf16>
    %1 = arith.extf %0 : vector<64x128xbf16> to vector<64x128xf32>
    %c0_1 = arith.constant 0 : index
    %c0_2 = arith.constant 0 : index
    %2 = vector.load %arg2[%c0_1, %c0_2] : memref<64x1xi32, #tpu.memory_space<vmem>>, vector<64x1xi32>
    %cst = arith.constant dense<0xFF800000> : vector<64xf32>
    %3 = vector.multi_reduction <maximumf>, %1, %cst [1] : vector<64x128xf32> to vector<64xf32>
    %4 = vector.shape_cast %3 : vector<64xf32> to vector<64x1xf32>
    %5 = vector.broadcast %4 : vector<64x1xf32> to vector<64x128xf32>
    %6 = arith.subf %1, %5 : vector<64x128xf32>
    %7 = math.exp %6 : vector<64x128xf32>
    %cst_3 = arith.constant dense<0.000000e+00> : vector<64xf32>
    %8 = vector.multi_reduction <add>, %7, %cst_3 [1] : vector<64x128xf32> to vector<64xf32>
    %9 = vector.shape_cast %8 : vector<64xf32> to vector<64x1xf32>
    %10 = math.log %9 : vector<64x1xf32>
    %11 = tpu.iota {dimensions = array<i32: 1>} : vector<64x128xi32>
    %12 = vector.broadcast %2 : vector<64x1xi32> to vector<64x128xi32>
    %13 = arith.cmpi eq, %11, %12 : vector<64x128xi32>
    %cst_4 = arith.constant 0.000000e+00 : f32
    %14 = vector.broadcast %cst_4 : f32 to vector<64x128xf32>
    %15 = arith.select %13, %6, %14 : vector<64x128xi1>, vector<64x128xf32>
    %cst_5 = arith.constant dense<0.000000e+00> : vector<64xf32>
    %16 = vector.multi_reduction <add>, %15, %cst_5 [1] : vector<64x128xf32> to vector<64xf32>
    %17 = vector.shape_cast %16 : vector<64xf32> to vector<64x1xf32>
    %cst_6 = arith.constant dense<0.000000e+00> : vector<64xf32>
    %18 = vector.multi_reduction <add>, %6, %cst_6 [1] : vector<64x128xf32> to vector<64xf32>
    %19 = vector.shape_cast %18 : vector<64xf32> to vector<64x1xf32>
    %20 = arith.subf %10, %17 : vector<64x1xf32>
    %cst_7 = arith.constant 0.899999976 : f32
    %21 = vector.broadcast %cst_7 : f32 to vector<64x1xf32>
    %22 = arith.mulf %21, %20 : vector<64x1xf32>
    %cst_8 = arith.constant 1.280000e+02 : f32
    %23 = vector.broadcast %cst_8 : f32 to vector<64x1xf32>
    %24 = arith.mulf %23, %10 : vector<64x1xf32>
    %25 = arith.subf %24, %19 : vector<64x1xf32>
    %cst_9 = arith.constant 7.812500e-04 : f32
    %26 = vector.broadcast %cst_9 : f32 to vector<64x1xf32>
    %27 = arith.mulf %26, %25 : vector<64x1xf32>
    %28 = arith.addf %22, %27 : vector<64x1xf32>
    %c0_10 = arith.constant 0 : index
    %c0_11 = arith.constant 0 : index
    %29 = vector.load %arg3[%c0_10, %c0_11] : memref<64x1xf32, #tpu.memory_space<vmem>>, vector<64x1xf32>
    tpu.vector_store %arg3[%c0_10, %c0_11], %28 {strides = array<i32>} : memref<64x1xf32, #tpu.memory_space<vmem>>, vector<64x1xf32>,
    return
  }
  func.func @transform_0(%arg0: i32) -> (i32, i32) {
    %c0_i32 = arith.constant 0 : i32
    %c0_i32_0 = arith.constant 0 : i32
    return %arg0, %c0_i32 : i32, i32
  }
  func.func @transform_1(%arg0: i32) -> (i32, i32) {
    %c0_i32 = arith.constant 0 : i32
    %c0_i32_0 = arith.constant 0 : i32
    return %arg0, %c0_i32 : i32, i32
  }
  func.func @transform_2(%arg0: i32) -> (i32, i32) {
    %c0_i32 = arith.constant 0 : i32
    %c0_i32_0 = arith.constant 0 : i32
    return %arg0, %c0_i32 : i32, i32
  }
}

</mosaic_0001>

<llo_original>
// kernel: tpu_custom_call.1
$region0: #{tpu_custom_call.1}
  #allocation0 [shape = 'u32[]', space=smem, size = 0x4, offset = 0x4, fixed_abs, tag = 'smem constant byte address 0x4 - core index']
  #allocation1 [shape = 'u32[144,128]{1,0:T(1,128)}', space=vmem, size = 0x12000, scoped, tag = 'internal scratch']
  %s0 = inlined_call_operand.vmem [shape: bf16[64,128], index: 0, kind: input, shape index: {}]
  %s1 = inlined_call_operand.vmem [shape: s32[64,1], index: 1, kind: input, shape index: {}]
  %s2 = inlined_call_operand.vmem [shape: f32[64,1], index: 2, kind: output, shape index: {}]
  %s3 = sld [smem:[#allocation0]]
  $region18: #{tpu_custom_call.1} parent=0
    _
  %s5 = ssub.s32 1, %s3
  %s6 = scalar_select 0, %s5, %s3
  // Predicated region
  $region2: #{tpu_custom_call.1} parent=0 // pred_check
    _
  $region3: #{tpu_custom_call.1} parent=0 // pred_check_branch
    %8 = sbr.rel (0) target = $region5
  $region4: #{tpu_custom_call.1} parent=0 // pred_region
    _
  $region5: #{tpu_custom_call.1} parent=0 // pred_fallthru
    _
  // Predicated region
  $region6: #{tpu_custom_call.1} parent=0 // pred_check
    _
  $region7: #{tpu_custom_call.1} parent=0 // pred_check_branch
    %10 = sbr.rel (0) target = $region9
  $region8: #{tpu_custom_call.1} parent=0 // pred_region
    _
  $region9: #{tpu_custom_call.1} parent=0 // pred_fallthru
    _
  %v11 = vld [vmem:[%s0] sm:$0xf]
  %v12 = vld [vmem:[%s0 + $0x4] sm:$0xf]
  %v13 = vld [vmem:[%s0 + $0x8] sm:$0xf]
  %v14 = vld [vmem:[%s0 + $0xc] sm:$0xf]
  %v15 = vld [vmem:[%s0 + $0x10] sm:$0xf]
  %v16 = vld [vmem:[%s0 + $0x14] sm:$0xf]
  %v17 = vld [vmem:[%s0 + $0x18] sm:$0xf]
  %v18 = vld [vmem:[%s0 + $0x1c] sm:$0xf]
  %v19 = vunpack.c.l.bf16 %v11
  %v20 = vunpack.c.l.bf16 %v12
  %v21 = vunpack.c.l.bf16 %v13
  %v22 = vunpack.c.l.bf16 %v14
  %v23 = vunpack.c.l.bf16 %v15
  %v24 = vunpack.c.l.bf16 %v16
  %v25 = vunpack.c.l.bf16 %v17
  %v26 = vunpack.c.l.bf16 %v18
  %v27 = vld [vmem:[%s1] sm:$0xff]
  %v28 = vld [vmem:[%s1 + $0x8] sm:$0xff]
  %v29 = vld [vmem:[%s1 + $0x10] sm:$0xff]
  %v30 = vld [vmem:[%s1 + $0x18] sm:$0xff]
  %v31 = vld [vmem:[%s1 + $0x20] sm:$0xff]
  %v32 = vld [vmem:[%s1 + $0x28] sm:$0xff]
  %v33 = vld [vmem:[%s1 + $0x30] sm:$0xff]
  %v34 = vld [vmem:[%s1 + $0x38] sm:$0xff]
  %35 = vmax.xlane.f32.xlu0 %v19
  %v36 = vpop.xlane.xlu0 %35
  %37 = vmax.xlane.f32.xlu0 %v20
  %v38 = vpop.xlane.xlu0 %37
  %39 = vmax.xlane.f32.xlu0 %v21
  %v40 = vpop.xlane.xlu0 %39
  %41 = vmax.xlane.f32.xlu0 %v22
  %v42 = vpop.xlane.xlu0 %41
  %43 = vmax.xlane.f32.xlu0 %v23
  %v44 = vpop.xlane.xlu0 %43
  %45 = vmax.xlane.f32.xlu0 %v24
  %v46 = vpop.xlane.xlu0 %45
  %47 = vmax.xlane.f32.xlu0 %v25
  %v48 = vpop.xlane.xlu0 %47
  %49 = vmax.xlane.f32.xlu0 %v26
  %v50 = vpop.xlane.xlu0 %49
  %v51 = vsub.f32 %v19, %v36
  %v52 = vsub.f32 %v20, %v38
  %v53 = vsub.f32 %v21, %v40
  %v54 = vsub.f32 %v22, %v42
  %v55 = vsub.f32 %v23, %v44
  %v56 = vsub.f32 %v24, %v46
  %v57 = vsub.f32 %v25, %v48
  %v58 = vsub.f32 %v26, %v50
  %v59 = vmul.f32 %v51, 1.442695
  %v60 = vpow.pop %v59
  %v61 = vmul.f32 %v52, 1.442695
  %v62 = vpow.pop %v61
  %v63 = vmul.f32 %v53, 1.442695
  %v64 = vpow.pop %v63
  %v65 = vmul.f32 %v54, 1.442695
  %v66 = vpow.pop %v65
  %v67 = vmul.f32 %v55, 1.442695
  %v68 = vpow.pop %v67
  %v69 = vmul.f32 %v56, 1.442695
  %v70 = vpow.pop %v69
  %v71 = vmul.f32 %v57, 1.442695
  %v72 = vpow.pop %v71
  %v73 = vmul.f32 %v58, 1.442695
  %v74 = vpow.pop %v73
  %75 = vadd.xlane.f32.xlu0 %v60
  %v76 = vpop.xlane.xlu0 %75
  %77 = vadd.xlane.f32.xlu0 %v62
  %v78 = vpop.xlane.xlu0 %77
  %79 = vadd.xlane.f32.xlu0 %v64
  %v80 = vpop.xlane.xlu0 %79
  %81 = vadd.xlane.f32.xlu0 %v66
  %v82 = vpop.xlane.xlu0 %81
  %83 = vadd.xlane.f32.xlu0 %v68
  %v84 = vpop.xlane.xlu0 %83
  %85 = vadd.xlane.f32.xlu0 %v70
  %v86 = vpop.xlane.xlu0 %85
  %87 = vadd.xlane.f32.xlu0 %v72
  %v88 = vpop.xlane.xlu0 %87
  %89 = vadd.xlane.f32.xlu0 %v74
  %v90 = vpop.xlane.xlu0 %89
  %v91 = vlog2.pop %v76
  %v92 = vmul.f32 %v91, 0.6931472
  %v93 = vlog2.pop %v78
  %v94 = vmul.f32 %v93, 0.6931472
  %v95 = vlog2.pop %v80
  %v96 = vmul.f32 %v95, 0.6931472
  %v97 = vlog2.pop %v82
  %v98 = vmul.f32 %v97, 0.6931472
  %v99 = vlog2.pop %v84
  %v100 = vmul.f32 %v99, 0.6931472
  %v101 = vlog2.pop %v86
  %v102 = vmul.f32 %v101, 0.6931472
  %v103 = vlog2.pop %v88
  %v104 = vmul.f32 %v103, 0.6931472
  %v105 = vlog2.pop %v90
  %v106 = vmul.f32 %v105, 0.6931472
  %v107 = vlaneseq
  %v108 = vand.u32 %v107, 127
  %109 = vset.pattern.permute.xlu0 0
  %110 = vperm.xlu0 %109, %v27
  %v111 = vpop.permute.xlu0 %110
  %112 = vset.pattern.permute.xlu0 0
  %113 = vperm.xlu0 %112, %v28
  %v114 = vpop.permute.xlu0 %113
  %115 = vset.pattern.permute.xlu0 0
  %116 = vperm.xlu0 %115, %v29
  %v117 = vpop.permute.xlu0 %116
  %118 = vset.pattern.permute.xlu0 0
  %119 = vperm.xlu0 %118, %v30
  %v120 = vpop.permute.xlu0 %119
  %121 = vset.pattern.permute.xlu0 0
  %122 = vperm.xlu0 %121, %v31
  %v123 = vpop.permute.xlu0 %122
  %124 = vset.pattern.permute.xlu0 0
  %125 = vperm.xlu0 %124, %v32
  %v126 = vpop.permute.xlu0 %125
  %127 = vset.pattern.permute.xlu0 0
  %128 = vperm.xlu0 %127, %v33
  %v129 = vpop.permute.xlu0 %128
  %130 = vset.pattern.permute.xlu0 0
  %131 = vperm.xlu0 %130, %v34
  %v132 = vpop.permute.xlu0 %131
  %vm133 = vcmp.eq.s32.totalorder %v108, %v111
  %vm134 = vcmp.eq.s32.totalorder %v108, %v114
  %vm135 = vcmp.eq.s32.totalorder %v108, %v117
  %vm136 = vcmp.eq.s32.totalorder %v108, %v120
  %vm137 = vcmp.eq.s32.totalorder %v108, %v123
  %vm138 = vcmp.eq.s32.totalorder %v108, %v126
  %vm139 = vcmp.eq.s32.totalorder %v108, %v129
  %vm140 = vcmp.eq.s32.totalorder %v108, %v132
  %v141 = vsel %vm133, %v51, 0.0
  %v142 = vsel %vm134, %v52, 0.0
  %v143 = vsel %vm135, %v53, 0.0
  %v144 = vsel %vm136, %v54, 0.0
  %v145 = vsel %vm137, %v55, 0.0
  %v146 = vsel %vm138, %v56, 0.0
  %v147 = vsel %vm139, %v57, 0.0
  %v148 = vsel %vm140, %v58, 0.0
  %149 = vadd.xlane.f32.xlu0 %v141
  %v150 = vpop.xlane.xlu0 %149
  %151 = vadd.xlane.f32.xlu0 %v142
  %v152 = vpop.xlane.xlu0 %151
  %153 = vadd.xlane.f32.xlu0 %v143
  %v154 = vpop.xlane.xlu0 %153
  %155 = vadd.xlane.f32.xlu0 %v144
  %v156 = vpop.xlane.xlu0 %155
  %157 = vadd.xlane.f32.xlu0 %v145
  %v158 = vpop.xlane.xlu0 %157
  %159 = vadd.xlane.f32.xlu0 %v146
  %v160 = vpop.xlane.xlu0 %159
  %161 = vadd.xlane.f32.xlu0 %v147
  %v162 = vpop.xlane.xlu0 %161
  %163 = vadd.xlane.f32.xlu0 %v148
  %v164 = vpop.xlane.xlu0 %163
  %165 = vadd.xlane.f32.xlu0 %v51
  %v166 = vpop.xlane.xlu0 %165
  %167 = vadd.xlane.f32.xlu0 %v52
  %v168 = vpop.xlane.xlu0 %167
  %169 = vadd.xlane.f32.xlu0 %v53
  %v170 = vpop.xlane.xlu0 %169
  %171 = vadd.xlane.f32.xlu0 %v54
  %v172 = vpop.xlane.xlu0 %171
  %173 = vadd.xlane.f32.xlu0 %v55
  %v174 = vpop.xlane.xlu0 %173
  %175 = vadd.xlane.f32.xlu0 %v56
  %v176 = vpop.xlane.xlu0 %175
  %177 = vadd.xlane.f32.xlu0 %v57
  %v178 = vpop.xlane.xlu0 %177
  %179 = vadd.xlane.f32.xlu0 %v58
  %v180 = vpop.xlane.xlu0 %179
  %v181 = vsub.f32 %v92, %v150
  %v182 = vsub.f32 %v94, %v152
  %v183 = vsub.f32 %v96, %v154
  %v184 = vsub.f32 %v98, %v156
  %v185 = vsub.f32 %v100, %v158
  %v186 = vsub.f32 %v102, %v160
  %v187 = vsub.f32 %v104, %v162
  %v188 = vsub.f32 %v106, %v164
  %v189 = vmul.f32 %v181, 0.9
  %v190 = vmul.f32 %v182, 0.9
  %v191 = vmul.f32 %v183, 0.9
  %v192 = vmul.f32 %v184, 0.9
  %v193 = vmul.f32 %v185, 0.9
  %v194 = vmul.f32 %v186, 0.9
  %v195 = vmul.f32 %v187, 0.9
  %v196 = vmul.f32 %v188, 0.9
  %v197 = vmul.f32 %v92, 128.0
  %v198 = vmul.f32 %v94, 128.0
  %v199 = vmul.f32 %v96, 128.0
  %v200 = vmul.f32 %v98, 128.0
  %v201 = vmul.f32 %v100, 128.0
  %v202 = vmul.f32 %v102, 128.0
  %v203 = vmul.f32 %v104, 128.0
  %v204 = vmul.f32 %v106, 128.0
  %v205 = vsub.f32 %v197, %v166
  %v206 = vsub.f32 %v198, %v168
  %v207 = vsub.f32 %v199, %v170
  %v208 = vsub.f32 %v200, %v172
  %v209 = vsub.f32 %v201, %v174
  %v210 = vsub.f32 %v202, %v176
  %v211 = vsub.f32 %v203, %v178
  %v212 = vsub.f32 %v204, %v180
  %v213 = vmul.f32 %v205, 0.00078125
  %v214 = vmul.f32 %v206, 0.00078125
  %v215 = vmul.f32 %v207, 0.00078125
  %v216 = vmul.f32 %v208, 0.00078125
  %v217 = vmul.f32 %v209, 0.00078125
  %v218 = vmul.f32 %v210, 0.00078125
  %v219 = vmul.f32 %v211, 0.00078125
  %v220 = vmul.f32 %v212, 0.00078125
  %v221 = vadd.f32 %v189, %v213
  %v222 = vadd.f32 %v190, %v214
  %v223 = vadd.f32 %v191, %v215
  %v224 = vadd.f32 %v192, %v216
  %v225 = vadd.f32 %v193, %v217
  %v226 = vadd.f32 %v194, %v218
  %v227 = vadd.f32 %v195, %v219
  %v228 = vadd.f32 %v196, %v220
  %vm229 = vcmask 7168
  %230 = vst.msk [vmem:[%s2] sm:$0xff] %vm229, %v221
  %231 = vst.msk [vmem:[%s2 + $0x8] sm:$0xff] %vm229, %v222
  %232 = vst.msk [vmem:[%s2 + $0x10] sm:$0xff] %vm229, %v223
  %233 = vst.msk [vmem:[%s2 + $0x18] sm:$0xff] %vm229, %v224
  %234 = vst.msk [vmem:[%s2 + $0x20] sm:$0xff] %vm229, %v225
  %235 = vst.msk [vmem:[%s2 + $0x28] sm:$0xff] %vm229, %v226
  %236 = vst.msk [vmem:[%s2 + $0x30] sm:$0xff] %vm229, %v227
  %237 = vst.msk [vmem:[%s2 + $0x38] sm:$0xff] %vm229, %v228
  // Predicated region
  $region10: #{tpu_custom_call.1} parent=0 // pred_check
    _
  $region11: #{tpu_custom_call.1} parent=0 // pred_check_branch
    %239 = sbr.rel (0) target = $region13
  $region12: #{tpu_custom_call.1} parent=0 // pred_region
    _
  $region13: #{tpu_custom_call.1} parent=0 // pred_fallthru
    _
  // Predicated region
  $region14: #{tpu_custom_call.1} parent=0 // pred_check
    _
  $region15: #{tpu_custom_call.1} parent=0 // pred_check_branch
    %241 = sbr.rel (0) target = $region17
  $region16: #{tpu_custom_call.1} parent=0 // pred_region
    _
  $region17: #{tpu_custom_call.1} parent=0 // pred_fallthru
    _

</llo_original>
